<compile_context>
chip_gen: v6e
topology: v6e:2x2x1
jax: 0.10.0
libtpu: 0.0.40
codegen_flags: <defaults>
</compile_context>

<pallas_src>
import jax
import jax.numpy as jnp
from jax.experimental import pallas as pl
from jax.experimental.pallas import tpu as pltpu


def _dual_embedding_kernel(xi_ref, yi_ref, xt_ref, yt_ref, xo_ref, yo_ref):
    # xi_ref / yi_ref : (N_pad,) int32 in SMEM  (full, un-blocked index vectors)
    # xt_ref / yt_ref : (Vx, Dx) / (Vy, Dy) f32 in VMEM (resident tables)
    # xo_ref / yo_ref : (block_rows, Dx) / (block_rows, Dy) output blocks
    block_rows = xo_ref.shape[0]
    base = pl.program_id(0) * block_rows
    for i in range(block_rows):          # static trip count -> fully unrolled
        xo_ref[pl.ds(i, 1), :] = xt_ref[pl.ds(xi_ref[base + i], 1), :]
        yo_ref[pl.ds(i, 1), :] = yt_ref[pl.ds(yi_ref[base + i], 1), :]


def _round_up(n, m):
    return -(-n // m) * m


@jax.jit
def fused_embedding(x_idx, w0, y_idx, w1):
    """(F.embedding(x_idx, w0), F.embedding(y_idx, w1)) in one Pallas call."""
    x_shape, y_shape = x_idx.shape, y_idx.shape
    vx, dx = w0.shape
    vy, dy = w1.shape

    # Flatten and clamp (PyTorch raises on OOB indices; clamping keeps the
    # kernel from ever forming an out-of-bounds VMEM slice).
    xf = jnp.clip(x_idx.reshape(-1).astype(jnp.int32), 0, vx - 1)
    yf = jnp.clip(y_idx.reshape(-1).astype(jnp.int32), 0, vy - 1)
    nx, ny = xf.shape[0], yf.shape[0]

    # Common padded row count (sublane multiple); pad only if actually needed.
    n_pad = _round_up(max(nx, ny), 8)
    block_rows = n_pad if n_pad <= 128 else 128
    n_pad = _round_up(n_pad, block_rows)
    if nx < n_pad:
        xf = jnp.pad(xf, (0, n_pad - nx))
    if ny < n_pad:
        yf = jnp.pad(yf, (0, n_pad - ny))

    grid = (n_pad // block_rows,)

    out_x, out_y = pl.pallas_call(
        _dual_embedding_kernel,
        out_shape=(
            jax.ShapeDtypeStruct((n_pad, dx), w0.dtype),
            jax.ShapeDtypeStruct((n_pad, dy), w1.dtype),
        ),
        grid=grid,
        in_specs=[
            pl.BlockSpec(memory_space=pltpu.MemorySpace.SMEM),   # x indices
            pl.BlockSpec(memory_space=pltpu.MemorySpace.SMEM),   # y indices
            pl.BlockSpec((vx, dx), lambda i: (0, 0)),            # w0, resident
            pl.BlockSpec((vy, dy), lambda i: (0, 0)),            # w1, resident
        ],
        out_specs=(
            pl.BlockSpec((block_rows, dx), lambda i: (i, 0)),
            pl.BlockSpec((block_rows, dy), lambda i: (i, 0)),
        ),
        compiler_params=pltpu.CompilerParams(
            dimension_semantics=("parallel",)),
    )(xf, yf, w0, w1)

    x_emb = out_x[:nx].reshape(x_shape + (dx,))
    y_emb = out_y[:ny].reshape(y_shape + (dy,))
    return x_emb, y_emb


class Model:
    """Mirror of the PyTorch Model: holds w1 = Parameter(rand(10, 128))."""

    def __init__(self, key):
        # torch.rand -> uniform [0, 1)
        self.w1 = jax.random.uniform(key, (10, 128), dtype=jnp.float32)

    def forward(self, x, w0, y):
        # Both embedding lookups fused into a single Pallas call.
        return fused_embedding(x, w0, y, self.w1)


if __name__ == "__main__":
    key = jax.random.PRNGKey(0)
    k_w1, k_w0, k_x, k_y = jax.random.split(key, 4)

    model = Model(k_w1)

    # Small shapes consistent with the forward: integer index tensors plus a
    # float embedding table passed as an input.
    B, S, V, D = 2, 8, 10, 128
    w0 = jax.random.uniform(k_w0, (V, D), dtype=jnp.float32)
    x = jax.random.randint(k_x, (B, S), 0, V, dtype=jnp.int32)
    y = jax.random.randint(k_y, (B, S), 0, V, dtype=jnp.int32)

    x_emb, y_emb = model.forward(x, w0, y)
    jax.block_until_ready((x_emb, y_emb))

    # Correctness check against plain-JAX gather reference.
    ref_x = jnp.take(w0, x, axis=0)
    ref_y = jnp.take(model.w1, y, axis=0)
    assert x_emb.shape == (B, S, D) and y_emb.shape == (B, S, D)
    assert jnp.allclose(x_emb, ref_x), "x embedding mismatch"
    assert jnp.allclose(y_emb, ref_y), "y embedding mismatch"

    print("KERNEL_OK")
</pallas_src>

<mosaic_0001>
module attributes {stable_mosaic.version = 11 : i64} {
  func.func @_dual_embedding_kernel(%arg0: i32, %arg1: memref<16xi32, #tpu.memory_space<smem>>, %arg2: memref<16xi32, #tpu.memory_space<smem>>, %arg3: memref<10x128xf32, #tpu.memory_space<vmem>>, %arg4: memref<10x128xf32, #tpu.memory_space<vmem>>, %arg5: memref<16x128xf32, #tpu.memory_space<vmem>>, %arg6: memref<16x128xf32, #tpu.memory_space<vmem>>) attributes {dimension_semantics = [#tpu.dimension_semantics<parallel>], iteration_bounds = array<i64: 1>, scalar_prefetch = 0 : i64, scratch_operands = 0 : i64, tpu.core_type = #tpu.core_type<tc>, window_params = [{transform_indices = @transform_0, window_bounds = array<i64: 16>}, {transform_indices = @transform_1, window_bounds = array<i64: 16>}, {pipeline_mode = #tpu.pipeline_mode<synchronous>, transform_indices = @transform_2, window_bounds = array<i64: 10, 128>}, {pipeline_mode = #tpu.pipeline_mode<synchronous>, transform_indices = @transform_3, window_bounds = array<i64: 10, 128>}, {transform_indices = @transform_4, window_bounds = array<i64: 16, 128>}, {transform_indices = @transform_5, window_bounds = array<i64: 16, 128>}]} {
    %c16_i32 = arith.constant 16 : i32
    %0 = arith.muli %arg0, %c16_i32 : i32
    %c0_i32 = arith.constant 0 : i32
    %1 = arith.addi %0, %c0_i32 : i32
    %2 = arith.index_cast %1 : i32 to index
    %3 = memref.load %arg1[%2] : memref<16xi32, #tpu.memory_space<smem>>
    %4 = arith.index_cast %3 : i32 to index
    %c0 = arith.constant 0 : index
    %5 = vector.load %arg3[%4, %c0] : memref<10x128xf32, #tpu.memory_space<vmem>>, vector<1x128xf32>
    %c0_0 = arith.constant 0 : index
    %c0_1 = arith.constant 0 : index
    %6 = vector.load %arg5[%c0_0, %c0_1] : memref<16x128xf32, #tpu.memory_space<vmem>>, vector<1x128xf32>
    tpu.vector_store %arg5[%c0_0, %c0_1], %5 {strides = array<i32>} : memref<16x128xf32, #tpu.memory_space<vmem>>, vector<1x128xf32>,
    %c0_i32_2 = arith.constant 0 : i32
    %7 = arith.addi %0, %c0_i32_2 : i32
    %8 = arith.index_cast %7 : i32 to index
    %9 = memref.load %arg2[%8] : memref<16xi32, #tpu.memory_space<smem>>
    %10 = arith.index_cast %9 : i32 to index
    %c0_3 = arith.constant 0 : index
    %11 = vector.load %arg4[%10, %c0_3] : memref<10x128xf32, #tpu.memory_space<vmem>>, vector<1x128xf32>
    %c0_4 = arith.constant 0 : index
    %c0_5 = arith.constant 0 : index
    %12 = vector.load %arg6[%c0_4, %c0_5] : memref<16x128xf32, #tpu.memory_space<vmem>>, vector<1x128xf32>
    tpu.vector_store %arg6[%c0_4, %c0_5], %11 {strides = array<i32>} : memref<16x128xf32, #tpu.memory_space<vmem>>, vector<1x128xf32>,
    %c1_i32 = arith.constant 1 : i32
    %13 = arith.addi %0, %c1_i32 : i32
    %14 = arith.index_cast %13 : i32 to index
    %15 = memref.load %arg1[%14] : memref<16xi32, #tpu.memory_space<smem>>
    %16 = arith.index_cast %15 : i32 to index
    %c0_6 = arith.constant 0 : index
    %17 = vector.load %arg3[%16, %c0_6] : memref<10x128xf32, #tpu.memory_space<vmem>>, vector<1x128xf32>
    %c1 = arith.constant 1 : index
    %c0_7 = arith.constant 0 : index
    %18 = vector.load %arg5[%c1, %c0_7] : memref<16x128xf32, #tpu.memory_space<vmem>>, vector<1x128xf32>
    tpu.vector_store %arg5[%c1, %c0_7], %17 {strides = array<i32>} : memref<16x128xf32, #tpu.memory_space<vmem>>, vector<1x128xf32>,
    %c1_i32_8 = arith.constant 1 : i32
    %19 = arith.addi %0, %c1_i32_8 : i32
    %20 = arith.index_cast %19 : i32 to index
    %21 = memref.load %arg2[%20] : memref<16xi32, #tpu.memory_space<smem>>
    %22 = arith.index_cast %21 : i32 to index
    %c0_9 = arith.constant 0 : index
    %23 = vector.load %arg4[%22, %c0_9] : memref<10x128xf32, #tpu.memory_space<vmem>>, vector<1x128xf32>
    %c1_10 = arith.constant 1 : index
    %c0_11 = arith.constant 0 : index
    %24 = vector.load %arg6[%c1_10, %c0_11] : memref<16x128xf32, #tpu.memory_space<vmem>>, vector<1x128xf32>
    tpu.vector_store %arg6[%c1_10, %c0_11], %23 {strides = array<i32>} : memref<16x128xf32, #tpu.memory_space<vmem>>, vector<1x128xf32>,
    %c2_i32 = arith.constant 2 : i32
    %25 = arith.addi %0, %c2_i32 : i32
    %26 = arith.index_cast %25 : i32 to index
    %27 = memref.load %arg1[%26] : memref<16xi32, #tpu.memory_space<smem>>
    %28 = arith.index_cast %27 : i32 to index
    %c0_12 = arith.constant 0 : index
    %29 = vector.load %arg3[%28, %c0_12] : memref<10x128xf32, #tpu.memory_space<vmem>>, vector<1x128xf32>
    %c2 = arith.constant 2 : index
    %c0_13 = arith.constant 0 : index
    %30 = vector.load %arg5[%c2, %c0_13] : memref<16x128xf32, #tpu.memory_space<vmem>>, vector<1x128xf32>
    tpu.vector_store %arg5[%c2, %c0_13], %29 {strides = array<i32>} : memref<16x128xf32, #tpu.memory_space<vmem>>, vector<1x128xf32>,
    %c2_i32_14 = arith.constant 2 : i32
    %31 = arith.addi %0, %c2_i32_14 : i32
    %32 = arith.index_cast %31 : i32 to index
    %33 = memref.load %arg2[%32] : memref<16xi32, #tpu.memory_space<smem>>
    %34 = arith.index_cast %33 : i32 to index
    %c0_15 = arith.constant 0 : index
    %35 = vector.load %arg4[%34, %c0_15] : memref<10x128xf32, #tpu.memory_space<vmem>>, vector<1x128xf32>
    %c2_16 = arith.constant 2 : index
    %c0_17 = arith.constant 0 : index
    %36 = vector.load %arg6[%c2_16, %c0_17] : memref<16x128xf32, #tpu.memory_space<vmem>>, vector<1x128xf32>
    tpu.vector_store %arg6[%c2_16, %c0_17], %35 {strides = array<i32>} : memref<16x128xf32, #tpu.memory_space<vmem>>, vector<1x128xf32>,
    %c3_i32 = arith.constant 3 : i32
    %37 = arith.addi %0, %c3_i32 : i32
    %38 = arith.index_cast %37 : i32 to index
    %39 = memref.load %arg1[%38] : memref<16xi32, #tpu.memory_space<smem>>
    %40 = arith.index_cast %39 : i32 to index
    %c0_18 = arith.constant 0 : index
    %41 = vector.load %arg3[%40, %c0_18] : memref<10x128xf32, #tpu.memory_space<vmem>>, vector<1x128xf32>
    %c3 = arith.constant 3 : index
    %c0_19 = arith.constant 0 : index
    %42 = vector.load %arg5[%c3, %c0_19] : memref<16x128xf32, #tpu.memory_space<vmem>>, vector<1x128xf32>
    tpu.vector_store %arg5[%c3, %c0_19], %41 {strides = array<i32>} : memref<16x128xf32, #tpu.memory_space<vmem>>, vector<1x128xf32>,
    %c3_i32_20 = arith.constant 3 : i32
    %43 = arith.addi %0, %c3_i32_20 : i32
    %44 = arith.index_cast %43 : i32 to index
    %45 = memref.load %arg2[%44] : memref<16xi32, #tpu.memory_space<smem>>
    %46 = arith.index_cast %45 : i32 to index
    %c0_21 = arith.constant 0 : index
    %47 = vector.load %arg4[%46, %c0_21] : memref<10x128xf32, #tpu.memory_space<vmem>>, vector<1x128xf32>
    %c3_22 = arith.constant 3 : index
    %c0_23 = arith.constant 0 : index
    %48 = vector.load %arg6[%c3_22, %c0_23] : memref<16x128xf32, #tpu.memory_space<vmem>>, vector<1x128xf32>
    tpu.vector_store %arg6[%c3_22, %c0_23], %47 {strides = array<i32>} : memref<16x128xf32, #tpu.memory_space<vmem>>, vector<1x128xf32>,
    %c4_i32 = arith.constant 4 : i32
    %49 = arith.addi %0, %c4_i32 : i32
    %50 = arith.index_cast %49 : i32 to index
    %51 = memref.load %arg1[%50] : memref<16xi32, #tpu.memory_space<smem>>
    %52 = arith.index_cast %51 : i32 to index
    %c0_24 = arith.constant 0 : index
    %53 = vector.load %arg3[%52, %c0_24] : memref<10x128xf32, #tpu.memory_space<vmem>>, vector<1x128xf32>
    %c4 = arith.constant 4 : index
    %c0_25 = arith.constant 0 : index
    %54 = vector.load %arg5[%c4, %c0_25] : memref<16x128xf32, #tpu.memory_space<vmem>>, vector<1x128xf32>
    tpu.vector_store %arg5[%c4, %c0_25], %53 {strides = array<i32>} : memref<16x128xf32, #tpu.memory_space<vmem>>, vector<1x128xf32>,
    %c4_i32_26 = arith.constant 4 : i32
    %55 = arith.addi %0, %c4_i32_26 : i32
    %56 = arith.index_cast %55 : i32 to index
    %57 = memref.load %arg2[%56] : memref<16xi32, #tpu.memory_space<smem>>
    %58 = arith.index_cast %57 : i32 to index
    %c0_27 = arith.constant 0 : index
    %59 = vector.load %arg4[%58, %c0_27] : memref<10x128xf32, #tpu.memory_space<vmem>>, vector<1x128xf32>
    %c4_28 = arith.constant 4 : index
    %c0_29 = arith.constant 0 : index
    %60 = vector.load %arg6[%c4_28, %c0_29] : memref<16x128xf32, #tpu.memory_space<vmem>>, vector<1x128xf32>
    tpu.vector_store %arg6[%c4_28, %c0_29], %59 {strides = array<i32>} : memref<16x128xf32, #tpu.memory_space<vmem>>, vector<1x128xf32>,
    %c5_i32 = arith.constant 5 : i32
    %61 = arith.addi %0, %c5_i32 : i32
    %62 = arith.index_cast %61 : i32 to index
    %63 = memref.load %arg1[%62] : memref<16xi32, #tpu.memory_space<smem>>
    %64 = arith.index_cast %63 : i32 to index
    %c0_30 = arith.constant 0 : index
    %65 = vector.load %arg3[%64, %c0_30] : memref<10x128xf32, #tpu.memory_space<vmem>>, vector<1x128xf32>
    %c5 = arith.constant 5 : index
    %c0_31 = arith.constant 0 : index
    %66 = vector.load %arg5[%c5, %c0_31] : memref<16x128xf32, #tpu.memory_space<vmem>>, vector<1x128xf32>
    tpu.vector_store %arg5[%c5, %c0_31], %65 {strides = array<i32>} : memref<16x128xf32, #tpu.memory_space<vmem>>, vector<1x128xf32>,
    %c5_i32_32 = arith.constant 5 : i32
    %67 = arith.addi %0, %c5_i32_32 : i32
    %68 = arith.index_cast %67 : i32 to index
    %69 = memref.load %arg2[%68] : memref<16xi32, #tpu.memory_space<smem>>
    %70 = arith.index_cast %69 : i32 to index
    %c0_33 = arith.constant 0 : index
    %71 = vector.load %arg4[%70, %c0_33] : memref<10x128xf32, #tpu.memory_space<vmem>>, vector<1x128xf32>
    %c5_34 = arith.constant 5 : index
    %c0_35 = arith.constant 0 : index
    %72 = vector.load %arg6[%c5_34, %c0_35] : memref<16x128xf32, #tpu.memory_space<vmem>>, vector<1x128xf32>
    tpu.vector_store %arg6[%c5_34, %c0_35], %71 {strides = array<i32>} : memref<16x128xf32, #tpu.memory_space<vmem>>, vector<1x128xf32>,
    %c6_i32 = arith.constant 6 : i32
    %73 = arith.addi %0, %c6_i32 : i32
    %74 = arith.index_cast %73 : i32 to index
    %75 = memref.load %arg1[%74] : memref<16xi32, #tpu.memory_space<smem>>
    %76 = arith.index_cast %75 : i32 to index
    %c0_36 = arith.constant 0 : index
    %77 = vector.load %arg3[%76, %c0_36] : memref<10x128xf32, #tpu.memory_space<vmem>>, vector<1x128xf32>
    %c6 = arith.constant 6 : index
    %c0_37 = arith.constant 0 : index
    %78 = vector.load %arg5[%c6, %c0_37] : memref<16x128xf32, #tpu.memory_space<vmem>>, vector<1x128xf32>
    tpu.vector_store %arg5[%c6, %c0_37], %77 {strides = array<i32>} : memref<16x128xf32, #tpu.memory_space<vmem>>, vector<1x128xf32>,
    %c6_i32_38 = arith.constant 6 : i32
    %79 = arith.addi %0, %c6_i32_38 : i32
    %80 = arith.index_cast %79 : i32 to index
    %81 = memref.load %arg2[%80] : memref<16xi32, #tpu.memory_space<smem>>
    %82 = arith.index_cast %81 : i32 to index
    %c0_39 = arith.constant 0 : index
    %83 = vector.load %arg4[%82, %c0_39] : memref<10x128xf32, #tpu.memory_space<vmem>>, vector<1x128xf32>
    %c6_40 = arith.constant 6 : index
    %c0_41 = arith.constant 0 : index
    %84 = vector.load %arg6[%c6_40, %c0_41] : memref<16x128xf32, #tpu.memory_space<vmem>>, vector<1x128xf32>
    tpu.vector_store %arg6[%c6_40, %c0_41], %83 {strides = array<i32>} : memref<16x128xf32, #tpu.memory_space<vmem>>, vector<1x128xf32>,
    %c7_i32 = arith.constant 7 : i32
    %85 = arith.addi %0, %c7_i32 : i32
    %86 = arith.index_cast %85 : i32 to index
    %87 = memref.load %arg1[%86] : memref<16xi32, #tpu.memory_space<smem>>
    %88 = arith.index_cast %87 : i32 to index
    %c0_42 = arith.constant 0 : index
    %89 = vector.load %arg3[%88, %c0_42] : memref<10x128xf32, #tpu.memory_space<vmem>>, vector<1x128xf32>
    %c7 = arith.constant 7 : index
    %c0_43 = arith.constant 0 : index
    %90 = vector.load %arg5[%c7, %c0_43] : memref<16x128xf32, #tpu.memory_space<vmem>>, vector<1x128xf32>
    tpu.vector_store %arg5[%c7, %c0_43], %89 {strides = array<i32>} : memref<16x128xf32, #tpu.memory_space<vmem>>, vector<1x128xf32>,
    %c7_i32_44 = arith.constant 7 : i32
    %91 = arith.addi %0, %c7_i32_44 : i32
    %92 = arith.index_cast %91 : i32 to index
    %93 = memref.load %arg2[%92] : memref<16xi32, #tpu.memory_space<smem>>
    %94 = arith.index_cast %93 : i32 to index
    %c0_45 = arith.constant 0 : index
    %95 = vector.load %arg4[%94, %c0_45] : memref<10x128xf32, #tpu.memory_space<vmem>>, vector<1x128xf32>
    %c7_46 = arith.constant 7 : index
    %c0_47 = arith.constant 0 : index
    %96 = vector.load %arg6[%c7_46, %c0_47] : memref<16x128xf32, #tpu.memory_space<vmem>>, vector<1x128xf32>
    tpu.vector_store %arg6[%c7_46, %c0_47], %95 {strides = array<i32>} : memref<16x128xf32, #tpu.memory_space<vmem>>, vector<1x128xf32>,
    %c8_i32 = arith.constant 8 : i32
    %97 = arith.addi %0, %c8_i32 : i32
    %98 = arith.index_cast %97 : i32 to index
    %99 = memref.load %arg1[%98] : memref<16xi32, #tpu.memory_space<smem>>
    %100 = arith.index_cast %99 : i32 to index
    %c0_48 = arith.constant 0 : index
    %101 = vector.load %arg3[%100, %c0_48] : memref<10x128xf32, #tpu.memory_space<vmem>>, vector<1x128xf32>
    %c8 = arith.constant 8 : index
    %c0_49 = arith.constant 0 : index
    %102 = vector.load %arg5[%c8, %c0_49] : memref<16x128xf32, #tpu.memory_space<vmem>>, vector<1x128xf32>
    tpu.vector_store %arg5[%c8, %c0_49], %101 {strides = array<i32>} : memref<16x128xf32, #tpu.memory_space<vmem>>, vector<1x128xf32>,
    %c8_i32_50 = arith.constant 8 : i32
    %103 = arith.addi %0, %c8_i32_50 : i32
    %104 = arith.index_cast %103 : i32 to index
    %105 = memref.load %arg2[%104] : memref<16xi32, #tpu.memory_space<smem>>
    %106 = arith.index_cast %105 : i32 to index
    %c0_51 = arith.constant 0 : index
    %107 = vector.load %arg4[%106, %c0_51] : memref<10x128xf32, #tpu.memory_space<vmem>>, vector<1x128xf32>
    %c8_52 = arith.constant 8 : index
    %c0_53 = arith.constant 0 : index
    %108 = vector.load %arg6[%c8_52, %c0_53] : memref<16x128xf32, #tpu.memory_space<vmem>>, vector<1x128xf32>
    tpu.vector_store %arg6[%c8_52, %c0_53], %107 {strides = array<i32>} : memref<16x128xf32, #tpu.memory_space<vmem>>, vector<1x128xf32>,
    %c9_i32 = arith.constant 9 : i32
    %109 = arith.addi %0, %c9_i32 : i32
    %110 = arith.index_cast %109 : i32 to index
    %111 = memref.load %arg1[%110] : memref<16xi32, #tpu.memory_space<smem>>
    %112 = arith.index_cast %111 : i32 to index
    %c0_54 = arith.constant 0 : index
    %113 = vector.load %arg3[%112, %c0_54] : memref<10x128xf32, #tpu.memory_space<vmem>>, vector<1x128xf32>
    %c9 = arith.constant 9 : index
    %c0_55 = arith.constant 0 : index
    %114 = vector.load %arg5[%c9, %c0_55] : memref<16x128xf32, #tpu.memory_space<vmem>>, vector<1x128xf32>
    tpu.vector_store %arg5[%c9, %c0_55], %113 {strides = array<i32>} : memref<16x128xf32, #tpu.memory_space<vmem>>, vector<1x128xf32>,
    %c9_i32_56 = arith.constant 9 : i32
    %115 = arith.addi %0, %c9_i32_56 : i32
    %116 = arith.index_cast %115 : i32 to index
    %117 = memref.load %arg2[%116] : memref<16xi32, #tpu.memory_space<smem>>
    %118 = arith.index_cast %117 : i32 to index
    %c0_57 = arith.constant 0 : index
    %119 = vector.load %arg4[%118, %c0_57] : memref<10x128xf32, #tpu.memory_space<vmem>>, vector<1x128xf32>
    %c9_58 = arith.constant 9 : index
    %c0_59 = arith.constant 0 : index
    %120 = vector.load %arg6[%c9_58, %c0_59] : memref<16x128xf32, #tpu.memory_space<vmem>>, vector<1x128xf32>
    tpu.vector_store %arg6[%c9_58, %c0_59], %119 {strides = array<i32>} : memref<16x128xf32, #tpu.memory_space<vmem>>, vector<1x128xf32>,
    %c10_i32 = arith.constant 10 : i32
    %121 = arith.addi %0, %c10_i32 : i32
    %122 = arith.index_cast %121 : i32 to index
    %123 = memref.load %arg1[%122] : memref<16xi32, #tpu.memory_space<smem>>
    %124 = arith.index_cast %123 : i32 to index
    %c0_60 = arith.constant 0 : index
    %125 = vector.load %arg3[%124, %c0_60] : memref<10x128xf32, #tpu.memory_space<vmem>>, vector<1x128xf32>
    %c10 = arith.constant 10 : index
    %c0_61 = arith.constant 0 : index
    %126 = vector.load %arg5[%c10, %c0_61] : memref<16x128xf32, #tpu.memory_space<vmem>>, vector<1x128xf32>
    tpu.vector_store %arg5[%c10, %c0_61], %125 {strides = array<i32>} : memref<16x128xf32, #tpu.memory_space<vmem>>, vector<1x128xf32>,
    %c10_i32_62 = arith.constant 10 : i32
    %127 = arith.addi %0, %c10_i32_62 : i32
    %128 = arith.index_cast %127 : i32 to index
    %129 = memref.load %arg2[%128] : memref<16xi32, #tpu.memory_space<smem>>
    %130 = arith.index_cast %129 : i32 to index
    %c0_63 = arith.constant 0 : index
    %131 = vector.load %arg4[%130, %c0_63] : memref<10x128xf32, #tpu.memory_space<vmem>>, vector<1x128xf32>
    %c10_64 = arith.constant 10 : index
    %c0_65 = arith.constant 0 : index
    %132 = vector.load %arg6[%c10_64, %c0_65] : memref<16x128xf32, #tpu.memory_space<vmem>>, vector<1x128xf32>
    tpu.vector_store %arg6[%c10_64, %c0_65], %131 {strides = array<i32>} : memref<16x128xf32, #tpu.memory_space<vmem>>, vector<1x128xf32>,
    %c11_i32 = arith.constant 11 : i32
    %133 = arith.addi %0, %c11_i32 : i32
    %134 = arith.index_cast %133 : i32 to index
    %135 = memref.load %arg1[%134] : memref<16xi32, #tpu.memory_space<smem>>
    %136 = arith.index_cast %135 : i32 to index
    %c0_66 = arith.constant 0 : index
    %137 = vector.load %arg3[%136, %c0_66] : memref<10x128xf32, #tpu.memory_space<vmem>>, vector<1x128xf32>
    %c11 = arith.constant 11 : index
    %c0_67 = arith.constant 0 : index
    %138 = vector.load %arg5[%c11, %c0_67] : memref<16x128xf32, #tpu.memory_space<vmem>>, vector<1x128xf32>
    tpu.vector_store %arg5[%c11, %c0_67], %137 {strides = array<i32>} : memref<16x128xf32, #tpu.memory_space<vmem>>, vector<1x128xf32>,
    %c11_i32_68 = arith.constant 11 : i32
    %139 = arith.addi %0, %c11_i32_68 : i32
    %140 = arith.index_cast %139 : i32 to index
    %141 = memref.load %arg2[%140] : memref<16xi32, #tpu.memory_space<smem>>
    %142 = arith.index_cast %141 : i32 to index
    %c0_69 = arith.constant 0 : index
    %143 = vector.load %arg4[%142, %c0_69] : memref<10x128xf32, #tpu.memory_space<vmem>>, vector<1x128xf32>
    %c11_70 = arith.constant 11 : index
    %c0_71 = arith.constant 0 : index
    %144 = vector.load %arg6[%c11_70, %c0_71] : memref<16x128xf32, #tpu.memory_space<vmem>>, vector<1x128xf32>
    tpu.vector_store %arg6[%c11_70, %c0_71], %143 {strides = array<i32>} : memref<16x128xf32, #tpu.memory_space<vmem>>, vector<1x128xf32>,
    %c12_i32 = arith.constant 12 : i32
    %145 = arith.addi %0, %c12_i32 : i32
    %146 = arith.index_cast %145 : i32 to index
    %147 = memref.load %arg1[%146] : memref<16xi32, #tpu.memory_space<smem>>
    %148 = arith.index_cast %147 : i32 to index
    %c0_72 = arith.constant 0 : index
    %149 = vector.load %arg3[%148, %c0_72] : memref<10x128xf32, #tpu.memory_space<vmem>>, vector<1x128xf32>
    %c12 = arith.constant 12 : index
    %c0_73 = arith.constant 0 : index
    %150 = vector.load %arg5[%c12, %c0_73] : memref<16x128xf32, #tpu.memory_space<vmem>>, vector<1x128xf32>
    tpu.vector_store %arg5[%c12, %c0_73], %149 {strides = array<i32>} : memref<16x128xf32, #tpu.memory_space<vmem>>, vector<1x128xf32>,
    %c12_i32_74 = arith.constant 12 : i32
    %151 = arith.addi %0, %c12_i32_74 : i32
    %152 = arith.index_cast %151 : i32 to index
    %153 = memref.load %arg2[%152] : memref<16xi32, #tpu.memory_space<smem>>
    %154 = arith.index_cast %153 : i32 to index
    %c0_75 = arith.constant 0 : index
    %155 = vector.load %arg4[%154, %c0_75] : memref<10x128xf32, #tpu.memory_space<vmem>>, vector<1x128xf32>
    %c12_76 = arith.constant 12 : index
    %c0_77 = arith.constant 0 : index
    %156 = vector.load %arg6[%c12_76, %c0_77] : memref<16x128xf32, #tpu.memory_space<vmem>>, vector<1x128xf32>
    tpu.vector_store %arg6[%c12_76, %c0_77], %155 {strides = array<i32>} : memref<16x128xf32, #tpu.memory_space<vmem>>, vector<1x128xf32>,
    %c13_i32 = arith.constant 13 : i32
    %157 = arith.addi %0, %c13_i32 : i32
    %158 = arith.index_cast %157 : i32 to index
    %159 = memref.load %arg1[%158] : memref<16xi32, #tpu.memory_space<smem>>
    %160 = arith.index_cast %159 : i32 to index
    %c0_78 = arith.constant 0 : index
    %161 = vector.load %arg3[%160, %c0_78] : memref<10x128xf32, #tpu.memory_space<vmem>>, vector<1x128xf32>
    %c13 = arith.constant 13 : index
    %c0_79 = arith.constant 0 : index
    %162 = vector.load %arg5[%c13, %c0_79] : memref<16x128xf32, #tpu.memory_space<vmem>>, vector<1x128xf32>
    tpu.vector_store %arg5[%c13, %c0_79], %161 {strides = array<i32>} : memref<16x128xf32, #tpu.memory_space<vmem>>, vector<1x128xf32>,
    %c13_i32_80 = arith.constant 13 : i32
    %163 = arith.addi %0, %c13_i32_80 : i32
    %164 = arith.index_cast %163 : i32 to index
    %165 = memref.load %arg2[%164] : memref<16xi32, #tpu.memory_space<smem>>
    %166 = arith.index_cast %165 : i32 to index
    %c0_81 = arith.constant 0 : index
    %167 = vector.load %arg4[%166, %c0_81] : memref<10x128xf32, #tpu.memory_space<vmem>>, vector<1x128xf32>
    %c13_82 = arith.constant 13 : index
    %c0_83 = arith.constant 0 : index
    %168 = vector.load %arg6[%c13_82, %c0_83] : memref<16x128xf32, #tpu.memory_space<vmem>>, vector<1x128xf32>
    tpu.vector_store %arg6[%c13_82, %c0_83], %167 {strides = array<i32>} : memref<16x128xf32, #tpu.memory_space<vmem>>, vector<1x128xf32>,
    %c14_i32 = arith.constant 14 : i32
    %169 = arith.addi %0, %c14_i32 : i32
    %170 = arith.index_cast %169 : i32 to index
    %171 = memref.load %arg1[%170] : memref<16xi32, #tpu.memory_space<smem>>
    %172 = arith.index_cast %171 : i32 to index
    %c0_84 = arith.constant 0 : index
    %173 = vector.load %arg3[%172, %c0_84] : memref<10x128xf32, #tpu.memory_space<vmem>>, vector<1x128xf32>
    %c14 = arith.constant 14 : index
    %c0_85 = arith.constant 0 : index
    %174 = vector.load %arg5[%c14, %c0_85] : memref<16x128xf32, #tpu.memory_space<vmem>>, vector<1x128xf32>
    tpu.vector_store %arg5[%c14, %c0_85], %173 {strides = array<i32>} : memref<16x128xf32, #tpu.memory_space<vmem>>, vector<1x128xf32>,
    %c14_i32_86 = arith.constant 14 : i32
    %175 = arith.addi %0, %c14_i32_86 : i32
    %176 = arith.index_cast %175 : i32 to index
    %177 = memref.load %arg2[%176] : memref<16xi32, #tpu.memory_space<smem>>
    %178 = arith.index_cast %177 : i32 to index
    %c0_87 = arith.constant 0 : index
    %179 = vector.load %arg4[%178, %c0_87] : memref<10x128xf32, #tpu.memory_space<vmem>>, vector<1x128xf32>
    %c14_88 = arith.constant 14 : index
    %c0_89 = arith.constant 0 : index
    %180 = vector.load %arg6[%c14_88, %c0_89] : memref<16x128xf32, #tpu.memory_space<vmem>>, vector<1x128xf32>
    tpu.vector_store %arg6[%c14_88, %c0_89], %179 {strides = array<i32>} : memref<16x128xf32, #tpu.memory_space<vmem>>, vector<1x128xf32>,
    %c15_i32 = arith.constant 15 : i32
    %181 = arith.addi %0, %c15_i32 : i32
    %182 = arith.index_cast %181 : i32 to index
    %183 = memref.load %arg1[%182] : memref<16xi32, #tpu.memory_space<smem>>
    %184 = arith.index_cast %183 : i32 to index
    %c0_90 = arith.constant 0 : index
    %185 = vector.load %arg3[%184, %c0_90] : memref<10x128xf32, #tpu.memory_space<vmem>>, vector<1x128xf32>
    %c15 = arith.constant 15 : index
    %c0_91 = arith.constant 0 : index
    %186 = vector.load %arg5[%c15, %c0_91] : memref<16x128xf32, #tpu.memory_space<vmem>>, vector<1x128xf32>
    tpu.vector_store %arg5[%c15, %c0_91], %185 {strides = array<i32>} : memref<16x128xf32, #tpu.memory_space<vmem>>, vector<1x128xf32>,
    %c15_i32_92 = arith.constant 15 : i32
    %187 = arith.addi %0, %c15_i32_92 : i32
    %188 = arith.index_cast %187 : i32 to index
    %189 = memref.load %arg2[%188] : memref<16xi32, #tpu.memory_space<smem>>
    %190 = arith.index_cast %189 : i32 to index
    %c0_93 = arith.constant 0 : index
    %191 = vector.load %arg4[%190, %c0_93] : memref<10x128xf32, #tpu.memory_space<vmem>>, vector<1x128xf32>
    %c15_94 = arith.constant 15 : index
    %c0_95 = arith.constant 0 : index
    %192 = vector.load %arg6[%c15_94, %c0_95] : memref<16x128xf32, #tpu.memory_space<vmem>>, vector<1x128xf32>
    tpu.vector_store %arg6[%c15_94, %c0_95], %191 {strides = array<i32>} : memref<16x128xf32, #tpu.memory_space<vmem>>, vector<1x128xf32>,
    return
  }
  func.func @transform_0(%arg0: i32) -> i32 {
    %c0_i32 = arith.constant 0 : i32
    %c0_i32_0 = arith.constant 0 : i32
    return %c0_i32 : i32
  }
  func.func @transform_1(%arg0: i32) -> i32 {
    %c0_i32 = arith.constant 0 : i32
    %c0_i32_0 = arith.constant 0 : i32
    return %c0_i32 : i32
  }
  func.func @transform_2(%arg0: i32) -> (i32, i32) {
    %c0_i32 = arith.constant 0 : i32
    %c0_i32_0 = arith.constant 0 : i32
    %c0_i32_1 = arith.constant 0 : i32
    return %c0_i32, %c0_i32_0 : i32, i32
  }
  func.func @transform_3(%arg0: i32) -> (i32, i32) {
    %c0_i32 = arith.constant 0 : i32
    %c0_i32_0 = arith.constant 0 : i32
    %c0_i32_1 = arith.constant 0 : i32
    return %c0_i32, %c0_i32_0 : i32, i32
  }
  func.func @transform_4(%arg0: i32) -> (i32, i32) {
    %c0_i32 = arith.constant 0 : i32
    %c0_i32_0 = arith.constant 0 : i32
    return %arg0, %c0_i32 : i32, i32
  }
  func.func @transform_5(%arg0: i32) -> (i32, i32) {
    %c0_i32 = arith.constant 0 : i32
    %c0_i32_0 = arith.constant 0 : i32
    return %arg0, %c0_i32 : i32, i32
  }
}

</mosaic_0001>

<llo_original>
// kernel: fused_embedding.1
$region0: #{fused_embedding.1}
  #allocation0 [shape = 'u32[]', space=smem, size = 0x4, offset = 0x4, fixed_abs, tag = 'smem constant byte address 0x4 - core index']
  #allocation1 [shape = 'u32[144,128]{1,0:T(1,128)}', space=vmem, size = 0x12000, scoped, tag = 'internal scratch']
  %s0 = inlined_call_operand.vmem [shape: s32[16], index: 0, kind: input, shape index: {}]
  %s1 = inlined_call_operand.vmem [shape: s32[16], index: 1, kind: input, shape index: {}]
  %s2 = inlined_call_operand.hbm [shape: f32[10,128], index: 2, kind: input, shape index: {}]
  %s3 = inlined_call_operand.vmem [shape: f32[10,128], index: 3, kind: input, shape index: {}]
  %s4 = inlined_call_operand.hbm [shape: f32[16,128], index: 4, kind: output, shape index: {0}]
  %s5 = inlined_call_operand.hbm [shape: f32[16,128], index: 5, kind: output, shape index: {1}]
  %6 = xla_tuple %s4, %s5
  %s7 = sld [smem:[#allocation0]]
  $region46: #{fused_embedding.1} parent=0
    _
  %s9 = ssub.s32 1, %s7
  %s10 = scalar_select 0, %s9, %s7
  $region1: #{fused_embedding.1} parent=0
    #allocation2 [shape = 'u8[512]{0}', space=smem, size = 0x200, scoped, tag = 'input window, operand 0, single buffered']
    #allocation3 [shape = 's32[1]{0}', space=sflag, size = 0x4, scoped, tag = 'scoped memory for fused_embedding.1']
    #allocation4 [shape = 's32[1]{0}', space=sflag, size = 0x4, scoped, tag = 'scoped memory for fused_embedding.1']
    #allocation5 [shape = 's32[1]{0}', space=sflag, size = 0x4, scoped, tag = 'scoped memory for fused_embedding.1']
    #allocation6 [shape = 'u8[512]{0}', space=smem, size = 0x200, scoped, tag = 'input window, operand 1, single buffered']
    #allocation7 [shape = 's32[1]{0}', space=sflag, size = 0x4, scoped, tag = 'scoped memory for fused_embedding.1']
    #allocation8 [shape = 'u8[8192]{0}', space=vmem, size = 0x2000, scoped, tag = 'input window, operand 2, single buffered']
    #allocation9 [shape = 'u8[8192]{0}', space=vmem, size = 0x2000, scoped, tag = 'output window, operand 0, single buffered']
    #allocation10 [shape = 'u8[8192]{0}', space=vmem, size = 0x2000, scoped, tag = 'output window, operand 1, single buffered']
    #allocation11 [shape = 's32[1]{0}', space=sflag, size = 0x4, scoped, tag = 'scoped memory for fused_embedding.1']
    %11 = vsyncpa [#allocation5], 0
    %12 = vsyncpa [#allocation7], 0
    %13 = vsyncpa [#allocation3], 0
    %14 = vsyncpa [#allocation4], 0
    %15 = vsyncpa [#allocation11], 0
    // Predicated region
    $region2: #{fused_embedding.1} parent=1 // pred_check
      _
    $region3: #{fused_embedding.1} parent=1 // pred_check_branch
      %17 = sbr.rel (0) target = $region5
    $region4: #{fused_embedding.1} parent=1 // pred_region
      %s19 = ssub.s32 16, 16
      %20 = vsyncadd [#allocation5], %s19
      %s22 = sshll.u32 %s0, 4
      %s23 = int_to_ptr.vmem [resolvable:$true] %s22
      %25 = dma.vmem_to_smem %s23, 16, [#allocation2], [#allocation5]
    $region5: #{fused_embedding.1} parent=1 // pred_fallthru
      _
    // Predicated region
    $region6: #{fused_embedding.1} parent=1 // pred_check
      _
    $region7: #{fused_embedding.1} parent=1 // pred_check_branch
      %27 = sbr.rel (0) target = $region9
    $region8: #{fused_embedding.1} parent=1 // pred_region
      %s29 = ssub.s32 16, 16
      %30 = vsyncadd [#allocation7], %s29
      %s32 = sshll.u32 %s1, 4
      %s33 = int_to_ptr.vmem [resolvable:$true] %s32
      %35 = dma.vmem_to_smem %s33, 16, [#allocation6], [#allocation7]
    $region9: #{fused_embedding.1} parent=1 // pred_fallthru
      _
    // Predicated region
    $region10: #{fused_embedding.1} parent=1 // pred_check
      _
    $region11: #{fused_embedding.1} parent=1 // pred_check_branch
      %37 = sbr.rel (0) target = $region13
    $region12: #{fused_embedding.1} parent=1 // pred_region
      %s39 = ssub.s32 256, 256
      %40 = vsyncadd [#allocation3], %s39
      %s41 = sshll.u32 [#allocation8], 4
      %s42 = int_to_ptr.vmem [resolvable:$true] %s41
      %47 = dma.hbm_to_vmem [thread:$0]  %s2, 256, %s42, [#allocation3], 128, 128, 8
    $region13: #{fused_embedding.1} parent=1 // pred_fallthru
      _
    // Predicated region
    $region14: #{fused_embedding.1} parent=1 // pred_check
      _
    $region15: #{fused_embedding.1} parent=1 // pred_check_branch
      %49 = sbr.rel (0) target = $region17
    $region16: #{fused_embedding.1} parent=1 // pred_region
      _
    $region17: #{fused_embedding.1} parent=1 // pred_fallthru
      _
    // Predicated region
    $region18: #{fused_embedding.1} parent=1 // pred_check
      _
    $region19: #{fused_embedding.1} parent=1 // pred_check_branch
      %51 = sbr.rel (0) target = $region21
    $region20: #{fused_embedding.1} parent=1 // pred_region
      %52 = dma.done [#allocation5], 16
    $region21: #{fused_embedding.1} parent=1 // pred_fallthru
      _
    // Predicated region
    $region22: #{fused_embedding.1} parent=1 // pred_check
      _
    $region23: #{fused_embedding.1} parent=1 // pred_check_branch
      %54 = sbr.rel (0) target = $region25
    $region24: #{fused_embedding.1} parent=1 // pred_region
      %55 = dma.done [#allocation7], 16
    $region25: #{fused_embedding.1} parent=1 // pred_fallthru
      _
    // Predicated region
    $region26: #{fused_embedding.1} parent=1 // pred_check
      _
    $region27: #{fused_embedding.1} parent=1 // pred_check_branch
      %57 = sbr.rel (0) target = $region29
    $region28: #{fused_embedding.1} parent=1 // pred_region
      %58 = dma.done [#allocation3], 256
    $region29: #{fused_embedding.1} parent=1 // pred_fallthru
      _
    %59 = sfence
    %s60 = smul.u32 0, 16
    %s61 = sld [smem:[#allocation2 + %s60]]
    %s62 = scalar_lea.vmem [#allocation8], %s61
    %v63 = vld [vmem:[%s62] sm:$0x1]
    %64 = vst [vmem:[#allocation9] sm:$0x1] %v63
    %s65 = sld [smem:[#allocation6 + %s60]]
    %s66 = scalar_lea.vmem %s3, %s65
    %v67 = vld [vmem:[%s66] sm:$0x1]
    %68 = vst [vmem:[#allocation10] sm:$0x1] %v67
    %s69 = sadd.s32 %s60, 1
    %s70 = sld [smem:[#allocation2 + %s69]]
    %s71 = scalar_lea.vmem [#allocation8], %s70
    %v72 = vld [vmem:[%s71] sm:$0x1]
    %73 = vst [vmem:[#allocation9 + $0x1] sm:$0x1] %v72
    %s74 = sld [smem:[#allocation6 + %s69]]
    %s75 = scalar_lea.vmem %s3, %s74
    %v76 = vld [vmem:[%s75] sm:$0x1]
    %77 = vst [vmem:[#allocation10 + $0x1] sm:$0x1] %v76
    %s78 = sadd.s32 %s60, 2
    %s79 = sld [smem:[#allocation2 + %s78]]
    %s80 = scalar_lea.vmem [#allocation8], %s79
    %v81 = vld [vmem:[%s80] sm:$0x1]
    %82 = vst [vmem:[#allocation9 + $0x2] sm:$0x1] %v81
    %s83 = sld [smem:[#allocation6 + %s78]]
    %s84 = scalar_lea.vmem %s3, %s83
    %v85 = vld [vmem:[%s84] sm:$0x1]
    %86 = vst [vmem:[#allocation10 + $0x2] sm:$0x1] %v85
    %s87 = sadd.s32 %s60, 3
    %s88 = sld [smem:[#allocation2 + %s87]]
    %s89 = scalar_lea.vmem [#allocation8], %s88
    %v90 = vld [vmem:[%s89] sm:$0x1]
    %91 = vst [vmem:[#allocation9 + $0x3] sm:$0x1] %v90
    %s92 = sld [smem:[#allocation6 + %s87]]
    %s93 = scalar_lea.vmem %s3, %s92
    %v94 = vld [vmem:[%s93] sm:$0x1]
    %95 = vst [vmem:[#allocation10 + $0x3] sm:$0x1] %v94
    %s96 = sadd.s32 %s60, 4
    %s97 = sld [smem:[#allocation2 + %s96]]
    %s98 = scalar_lea.vmem [#allocation8], %s97
    %v99 = vld [vmem:[%s98] sm:$0x1]
    %100 = vst [vmem:[#allocation9 + $0x4] sm:$0x1] %v99
    %s101 = sld [smem:[#allocation6 + %s96]]
    %s102 = scalar_lea.vmem %s3, %s101
    %v103 = vld [vmem:[%s102] sm:$0x1]
    %104 = vst [vmem:[#allocation10 + $0x4] sm:$0x1] %v103
    %s105 = sadd.s32 %s60, 5
    %s106 = sld [smem:[#allocation2 + %s105]]
    %s107 = scalar_lea.vmem [#allocation8], %s106
    %v108 = vld [vmem:[%s107] sm:$0x1]
    %109 = vst [vmem:[#allocation9 + $0x5] sm:$0x1] %v108
    %s110 = sld [smem:[#allocation6 + %s105]]
    %s111 = scalar_lea.vmem %s3, %s110
    %v112 = vld [vmem:[%s111] sm:$0x1]
    %113 = vst [vmem:[#allocation10 + $0x5] sm:$0x1] %v112
    %s114 = sadd.s32 %s60, 6
    %s115 = sld [smem:[#allocation2 + %s114]]
    %s116 = scalar_lea.vmem [#allocation8], %s115
    %v117 = vld [vmem:[%s116] sm:$0x1]
    %118 = vst [vmem:[#allocation9 + $0x6] sm:$0x1] %v117
    %s119 = sld [smem:[#allocation6 + %s114]]
    %s120 = scalar_lea.vmem %s3, %s119
    %v121 = vld [vmem:[%s120] sm:$0x1]
    %122 = vst [vmem:[#allocation10 + $0x6] sm:$0x1] %v121
    %s123 = sadd.s32 %s60, 7
    %s124 = sld [smem:[#allocation2 + %s123]]
    %s125 = scalar_lea.vmem [#allocation8], %s124
    %v126 = vld [vmem:[%s125] sm:$0x1]
    %127 = vst [vmem:[#allocation9 + $0x7] sm:$0x1] %v126
    %s128 = sld [smem:[#allocation6 + %s123]]
    %s129 = scalar_lea.vmem %s3, %s128
    %v130 = vld [vmem:[%s129] sm:$0x1]
    %131 = vst [vmem:[#allocation10 + $0x7] sm:$0x1] %v130
    %s132 = sadd.s32 %s60, 8
    %s133 = sld [smem:[#allocation2 + %s132]]
    %s134 = scalar_lea.vmem [#allocation8], %s133
    %v135 = vld [vmem:[%s134] sm:$0x1]
    %136 = vst [vmem:[#allocation9 + $0x8] sm:$0x1] %v135
    %s137 = sld [smem:[#allocation6 + %s132]]
    %s138 = scalar_lea.vmem %s3, %s137
    %v139 = vld [vmem:[%s138] sm:$0x1]
    %140 = vst [vmem:[#allocation10 + $0x8] sm:$0x1] %v139
    %s141 = sadd.s32 %s60, 9
    %s142 = sld [smem:[#allocation2 + %s141]]
    %s143 = scalar_lea.vmem [#allocation8], %s142
    %v144 = vld [vmem:[%s143] sm:$0x1]
    %145 = vst [vmem:[#allocation9 + $0x9] sm:$0x1] %v144
    %s146 = sld [smem:[#allocation6 + %s141]]
    %s147 = scalar_lea.vmem %s3, %s146
    %v148 = vld [vmem:[%s147] sm:$0x1]
    %149 = vst [vmem:[#allocation10 + $0x9] sm:$0x1] %v148
    %s150 = sadd.s32 %s60, 10
    %s151 = sld [smem:[#allocation2 + %s150]]
    %s152 = scalar_lea.vmem [#allocation8], %s151
    %v153 = vld [vmem:[%s152] sm:$0x1]
    %154 = vst [vmem:[#allocation9 + $0xa] sm:$0x1] %v153
    %s155 = sld [smem:[#allocation6 + %s150]]
    %s156 = scalar_lea.vmem %s3, %s155
    %v157 = vld [vmem:[%s156] sm:$0x1]
    %158 = vst [vmem:[#allocation10 + $0xa] sm:$0x1] %v157
    %s159 = sadd.s32 %s60, 11
    %s160 = sld [smem:[#allocation2 + %s159]]
    %s161 = scalar_lea.vmem [#allocation8], %s160
    %v162 = vld [vmem:[%s161] sm:$0x1]
    %163 = vst [vmem:[#allocation9 + $0xb] sm:$0x1] %v162
    %s164 = sld [smem:[#allocation6 + %s159]]
    %s165 = scalar_lea.vmem %s3, %s164
    %v166 = vld [vmem:[%s165] sm:$0x1]
    %167 = vst [vmem:[#allocation10 + $0xb] sm:$0x1] %v166
    %s168 = sadd.s32 %s60, 12
    %s169 = sld [smem:[#allocation2 + %s168]]
    %s170 = scalar_lea.vmem [#allocation8], %s169
    %v171 = vld [vmem:[%s170] sm:$0x1]
    %172 = vst [vmem:[#allocation9 + $0xc] sm:$0x1] %v171
    %s173 = sld [smem:[#allocation6 + %s168]]
    %s174 = scalar_lea.vmem %s3, %s173
    %v175 = vld [vmem:[%s174] sm:$0x1]
    %176 = vst [vmem:[#allocation10 + $0xc] sm:$0x1] %v175
    %s177 = sadd.s32 %s60, 13
    %s178 = sld [smem:[#allocation2 + %s177]]
    %s179 = scalar_lea.vmem [#allocation8], %s178
    %v180 = vld [vmem:[%s179] sm:$0x1]
    %181 = vst [vmem:[#allocation9 + $0xd] sm:$0x1] %v180
    %s182 = sld [smem:[#allocation6 + %s177]]
    %s183 = scalar_lea.vmem %s3, %s182
    %v184 = vld [vmem:[%s183] sm:$0x1]
    %185 = vst [vmem:[#allocation10 + $0xd] sm:$0x1] %v184
    %s186 = sadd.s32 %s60, 14
    %s187 = sld [smem:[#allocation2 + %s186]]
    %s188 = scalar_lea.vmem [#allocation8], %s187
    %v189 = vld [vmem:[%s188] sm:$0x1]
    %190 = vst [vmem:[#allocation9 + $0xe] sm:$0x1] %v189
    %s191 = sld [smem:[#allocation6 + %s186]]
    %s192 = scalar_lea.vmem %s3, %s191
    %v193 = vld [vmem:[%s192] sm:$0x1]
    %194 = vst [vmem:[#allocation10 + $0xe] sm:$0x1] %v193
    %s195 = sadd.s32 %s60, 15
    %s196 = sld [smem:[#allocation2 + %s195]]
    %s197 = scalar_lea.vmem [#allocation8], %s196
    %v198 = vld [vmem:[%s197] sm:$0x1]
    %199 = vst [vmem:[#allocation9 + $0xf] sm:$0x1] %v198
    %s200 = sld [smem:[#allocation6 + %s195]]
    %s201 = scalar_lea.vmem %s3, %s200
    %v202 = vld [vmem:[%s201] sm:$0x1]
    %203 = vst [vmem:[#allocation10 + $0xf] sm:$0x1] %v202
    // Predicated region
    $region30: #{fused_embedding.1} parent=1 // pred_check
      _
    $region31: #{fused_embedding.1} parent=1 // pred_check_branch
      %205 = sbr.rel (0) target = $region33
    $region32: #{fused_embedding.1} parent=1 // pred_region
      %s207 = ssub.s32 256, 256
      %208 = vsyncadd [#allocation4], %s207
      %s209 = sshll.u32 [#allocation9], 4
      %s210 = int_to_ptr.vmem [resolvable:$true] %s209
      %215 = dma.vmem_to_hbm [thread:$0]  %s210, 256, %s4, [#allocation4], 128, 128, 8
    $region33: #{fused_embedding.1} parent=1 // pred_fallthru
      _
    // Predicated region
    $region34: #{fused_embedding.1} parent=1 // pred_check
      _
    $region35: #{fused_embedding.1} parent=1 // pred_check_branch
      %217 = sbr.rel (0) target = $region37
    $region36: #{fused_embedding.1} parent=1 // pred_region
      %s219 = ssub.s32 256, 256
      %220 = vsyncadd [#allocation11], %s219
      %s221 = sshll.u32 [#allocation10], 4
      %s222 = int_to_ptr.vmem [resolvable:$true] %s221
      %227 = dma.vmem_to_hbm [thread:$0]  %s222, 256, %s5, [#allocation11], 128, 128, 8
    $region37: #{fused_embedding.1} parent=1 // pred_fallthru
      _
    // Predicated region
    $region38: #{fused_embedding.1} parent=1 // pred_check
      _
    $region39: #{fused_embedding.1} parent=1 // pred_check_branch
      %229 = sbr.rel (0) target = $region41
    $region40: #{fused_embedding.1} parent=1 // pred_region
      %230 = dma.done [#allocation4], 256
    $region41: #{fused_embedding.1} parent=1 // pred_fallthru
      _
    // Predicated region
    $region42: #{fused_embedding.1} parent=1 // pred_check
      _
    $region43: #{fused_embedding.1} parent=1 // pred_check_branch
      %232 = sbr.rel (0) target = $region45
    $region44: #{fused_embedding.1} parent=1 // pred_region
      %233 = dma.done [#allocation11], 256
    $region45: #{fused_embedding.1} parent=1 // pred_fallthru
      _
    %234 = vsyncpa [#allocation3], 1
    %235 = vsyncpa [#allocation4], 1
    %236 = vsyncpa [#allocation11], 1
    %237 = vsyncpa [#allocation5], 1
    %238 = vsyncpa [#allocation7], 1

</llo_original>
